<compile_context>
chip_gen: v5e
topology: v5e:2x2
jax: 0.10.0
libtpu: 0.0.40
codegen_flags: <defaults>
</compile_context>

<pallas_src>
import functools

import jax
import jax.numpy as jnp
from jax.experimental import pallas as pl
from jax.experimental.pallas import tpu as pltpu

# Stay comfortably under v7x's 64 MiB physical VMEM (v5e/v6e have 128 MiB).
_VMEM_LIMIT_BYTES = 48 * 1024 * 1024


def _pick_tile(dim: int, target: int, align: int = 8) -> int:
    """Largest `align`-multiple tile <= target that divides dim.

    Falls back to the full dim (always a legal block shape)."""
    if dim <= target:
        return dim
    t = (target // align) * align
    while t >= align:
        if dim % t == 0:
            return t
        t -= align
    # TODO(synk): pad inputs to friendly multiples instead of falling back to a
    # full-dim block when no aligned divisor exists (awkward shapes only).
    return dim


# ----------------------------------------------------------------------------
# Kernel 1: tiled matmul  y = x @ w  (bf16 MXU operands, f32 accumulate)
# ----------------------------------------------------------------------------
def _matmul_kernel(x_ref, w_ref, o_ref, acc_ref):
    @pl.when(pl.program_id(2) == 0)
    def _init():
        acc_ref[...] = jnp.zeros(acc_ref.shape, jnp.float32)

    x = x_ref[...]
    w = w_ref[...]
    if x.dtype != w.dtype:
        # In-kernel cast: reading f32 once (4 B/elem) beats a wrapper-side cast
        # (f32 read + bf16 write + bf16 re-read = 8 B/elem).
        x = x.astype(w.dtype)
    acc_ref[...] += jnp.dot(x, w, preferred_element_type=jnp.float32)

    @pl.when(pl.program_id(2) == pl.num_programs(2) - 1)
    def _store():
        o_ref[...] = acc_ref[...].astype(o_ref.dtype)


def pallas_matmul(x, w, out_dtype=jnp.float32,
                  tm_target=512, tn_target=512, tk_target=512):
    M, K = x.shape
    K2, N = w.shape
    assert K == K2
    tm = _pick_tile(M, tm_target, align=16)    # 16-sublane friendly for bf16
    tn = _pick_tile(N, tn_target, align=128)
    tk = _pick_tile(K, tk_target, align=128)
    grid = (M // tm, N // tn, K // tk)
    bytes_io = int(M * K * x.dtype.itemsize + K * N * w.dtype.itemsize
                   + M * N * jnp.dtype(out_dtype).itemsize)
    return pl.pallas_call(
        _matmul_kernel,
        out_shape=jax.ShapeDtypeStruct((M, N), out_dtype),
        grid=grid,
        in_specs=[
            pl.BlockSpec((tm, tk), lambda i, j, kk: (i, kk)),
            pl.BlockSpec((tk, tn), lambda i, j, kk: (kk, j)),
        ],
        out_specs=pl.BlockSpec((tm, tn), lambda i, j, kk: (i, j)),
        scratch_shapes=[pltpu.VMEM((tm, tn), jnp.float32)],
        compiler_params=pltpu.CompilerParams(
            dimension_semantics=("parallel", "parallel", "arbitrary"),
            vmem_limit_bytes=_VMEM_LIMIT_BYTES),
        cost_estimate=pl.CostEstimate(flops=2 * M * N * K, transcendentals=0,
                                      bytes_accessed=bytes_io),
    )(x, w)


# ----------------------------------------------------------------------------
# Kernel 2: fused per-head RMSNorm + neox RoPE for q AND k in one kernel.
#   Grid (S-block, head) with head innermost -> cos/sin DMAs elided across heads.
#   Weight row 0 = q_norm_w * softmax_scale, row 1 = k_norm_w.
#   RoPE (half-split form):
#     out[: d/2] = x1*cos - x2*sin ; out[d/2 :] = x2*cos + x1*sin
# ----------------------------------------------------------------------------
def _norm_rope_kernel(x_ref, w_ref, cos_ref, sin_ref, o_ref, *, eps, d_half):
    x = x_ref[...].astype(jnp.float32)
    var = jnp.mean(x * x, axis=-1, keepdims=True)
    xn = x * jax.lax.rsqrt(var + eps) * w_ref[...]
    x1 = xn[:, :d_half]
    x2 = xn[:, d_half:]
    cos = cos_ref[...]
    sin = sin_ref[...]
    out = jnp.concatenate([x1 * cos - x2 * sin, x2 * cos + x1 * sin], axis=1)
    o_ref[...] = out.astype(o_ref.dtype)


def pallas_qk_norm_rope(qkv, qk_norm_w, cos, sin, *, num_q_heads, num_kv_heads,
                        head_dim, eps, out_dtype, ts_target=512):
    S = qkv.shape[0]
    d = head_dim
    nh = num_q_heads
    n_total = num_q_heads + num_kv_heads
    ts = _pick_tile(S, ts_target, align=8)
    grid = (S // ts, n_total)                  # head axis innermost
    return pl.pallas_call(
        functools.partial(_norm_rope_kernel, eps=eps, d_half=d // 2),
        out_shape=jax.ShapeDtypeStruct((S, n_total * d), out_dtype),
        grid=grid,
        in_specs=[
            # q heads are qkv column-blocks [0, nh), k heads are [nh, nh+nkv).
            pl.BlockSpec((ts, d), lambda s, h: (s, h)),
            # weight row 0 for q heads, row 1 for k heads (nkv <= nh always).
            pl.BlockSpec((1, d), lambda s, h: (h // nh, 0)),
            pl.BlockSpec((ts, d // 2), lambda s, h: (s, 0)),
            pl.BlockSpec((ts, d // 2), lambda s, h: (s, 0)),
        ],
        out_specs=pl.BlockSpec((ts, d), lambda s, h: (s, h)),
        compiler_params=pltpu.CompilerParams(
            dimension_semantics=("parallel", "parallel"),
            vmem_limit_bytes=_VMEM_LIMIT_BYTES),
    )(qkv, qk_norm_w, cos, sin)


# ----------------------------------------------------------------------------
# Kernel 3: flash-style causal GQA attention with online softmax + group packing.
#   grid = (num_kv_heads, S//tq, S//tkv), kv axis innermost / "arbitrary".
#   Each grid step processes ALL `group` q heads of one KV head against a single
#   K/V tile (streamed once).  Fully-masked KV tiles skip compute and DMA.
# ----------------------------------------------------------------------------
def _flash_attn_kernel(q_ref, k_ref, v_ref, o_ref, m_ref, l_ref, acc_ref,
                       *, tq, tkv, group, d):
    qb = pl.program_id(1)
    kvb = pl.program_id(2)

    @pl.when(kvb == 0)
    def _init():
        m_ref[...] = jnp.full(m_ref.shape, -jnp.inf, jnp.float32)
        l_ref[...] = jnp.zeros(l_ref.shape, jnp.float32)
        acc_ref[...] = jnp.zeros(acc_ref.shape, jnp.float32)

    q_start = qb * tq
    kv_start = kvb * tkv

    def tile_update(apply_mask):
        k = k_ref[...]
        v = v_ref[...]
        if apply_mask:
            # Cheap mask: (tq,1) x (1,tkv) broadcast instead of two full tiles.
            row = q_start + jax.lax.broadcasted_iota(jnp.int32, (tq, 1), 0)
            col = kv_start + jax.lax.broadcasted_iota(jnp.int32, (1, tkv), 1)
            mask = col <= row
        for g in range(group):                       # unrolled GQA group loop
            sl = slice(g * d, (g + 1) * d)
            # contract last dims -> no explicit K transpose (no XLU relayout)
            s = jax.lax.dot_general(q_ref[:, sl], k, (((1,), (1,)), ((), ())),
                                    preferred_element_type=jnp.float32)
            if apply_mask:
                s = jnp.where(mask, s, -jnp.inf)
            m_prev = m_ref[g]
            m_new = jnp.maximum(m_prev, jnp.max(s, axis=-1, keepdims=True))
            alpha = jnp.exp(m_prev - m_new)
            p = jnp.exp(s - m_new)
            l_ref[g] = alpha * l_ref[g] + jnp.sum(p, axis=-1, keepdims=True)
            acc_ref[:, sl] = alpha * acc_ref[:, sl] + jnp.dot(
                p.astype(v.dtype), v, preferred_element_type=jnp.float32)
            m_ref[g] = m_new

    fully_visible = kv_start + tkv - 1 <= q_start            # below the diagonal
    on_diagonal = jnp.logical_and(kv_start < q_start + tq,   # crosses diagonal
                                  kv_start + tkv - 1 > q_start)

    @pl.when(fully_visible)
    def _unmasked():
        tile_update(False)

    @pl.when(on_diagonal)
    def _masked():
        tile_update(True)

    @pl.when(kvb == pl.num_programs(2) - 1)
    def _finalize():
        for g in range(group):
            sl = slice(g * d, (g + 1) * d)
            o_ref[:, sl] = (acc_ref[:, sl] / l_ref[g]).astype(o_ref.dtype)


def pallas_flash_causal_gqa(qk_rope, qkv, *, num_heads, num_kv_heads, head_dim,
                            out_dtype, tq_target=512, tkv_target=512):
    S = qk_rope.shape[0]
    d = head_dim
    nh, nkv = num_heads, num_kv_heads
    group = nh // nkv
    tq = _pick_tile(S, tq_target, align=8)
    tkv = _pick_tile(S, tkv_target, align=8)
    grid = (nkv, S // tq, S // tkv)

    def clamp_kv(qb, kvb):
        # Clamp the kv block index to the last causally-needed block: repeating
        # the same block index lets Pallas elide the DMA for fully-masked tiles
        # (pl.when alone only skips the compute, not the copy).
        last = (qb * tq + tq - 1) // tkv
        return jnp.minimum(kvb, last)

    itemsize = jnp.dtype(out_dtype).itemsize
    bytes_io = int((2 * S * nh * d + 2 * S * nkv * d * max(1, (S // tq) // 2))
                   * itemsize)
    return pl.pallas_call(
        functools.partial(_flash_attn_kernel, tq=tq, tkv=tkv, group=group, d=d),
        out_shape=jax.ShapeDtypeStruct((S, nh * d), out_dtype),
        grid=grid,
        in_specs=[
            # q: all `group` heads of KV-head h, one (tq, group*d) block.
            pl.BlockSpec((tq, group * d), lambda h, qb, kvb: (qb, h)),
            # k: column block nh+h of the fused qk_rope activation.
            pl.BlockSpec((tkv, d),
                         lambda h, qb, kvb: (clamp_kv(qb, kvb), nh + h)),
            # v: read straight out of the fused qkv activation.
            pl.BlockSpec((tkv, d),
                         lambda h, qb, kvb: (clamp_kv(qb, kvb), nh + nkv + h)),
            # TODO(synk): if xprof shows exposed K/V DMA on v5e, add
            # pipeline_mode=pl.Buffered(3) on the K/V specs.
        ],
        out_specs=pl.BlockSpec((tq, group * d), lambda h, qb, kvb: (qb, h)),
        scratch_shapes=[
            pltpu.VMEM((group, tq, 1), jnp.float32),    # running max per q head
            pltpu.VMEM((group, tq, 1), jnp.float32),    # running sum per q head
            pltpu.VMEM((tq, group * d), jnp.float32),   # output accumulator
        ],
        compiler_params=pltpu.CompilerParams(
            dimension_semantics=("parallel", "parallel", "arbitrary"),
            vmem_limit_bytes=_VMEM_LIMIT_BYTES),
        cost_estimate=pl.CostEstimate(
            flops=int(2 * nh * S * S * d),              # ~causal half
            transcendentals=int(nh * S * S // 2),
            bytes_accessed=bytes_io),
    )(qk_rope, qk_rope, qkv)


# ----------------------------------------------------------------------------
# Qwen3Attention forward (single sequence prefill, tp_size = 1)
# ----------------------------------------------------------------------------
class Qwen3AttentionPallas:
    def __init__(self, hidden_size, num_heads, num_kv_heads, head_dim=None,
                 rope_theta=1000000.0, rms_norm_eps=1e-6, key=None):
        if key is None:
            key = jax.random.PRNGKey(0)
        self.hidden_size = hidden_size
        self.num_heads = num_heads
        self.num_kv_heads = num_kv_heads
        assert num_heads % num_kv_heads == 0 and num_heads >= num_kv_heads
        self.head_dim = head_dim or hidden_size // num_heads
        assert self.head_dim % 128 == 0, "head_dim must be lane-dense (mult of 128)"
        self.q_size = self.num_heads * self.head_dim
        self.kv_size = self.num_kv_heads * self.head_dim
        self.scaling = self.head_dim ** (-0.5)
        self.rope_theta = rope_theta
        self.rms_norm_eps = rms_norm_eps

        k1, k2 = jax.random.split(key, 2)
        # Weights kept in bf16 (MXU operands); accumulation stays f32 in-kernel.
        init = lambda k, shape: (0.02 * jax.random.normal(k, shape, dtype=jnp.float32)
                                 ).astype(jnp.bfloat16)
        self.w_qkv = init(k1, (hidden_size, self.q_size + 2 * self.kv_size))
        self.w_o = init(k2, (self.q_size, hidden_size))
        self.q_norm_w = jnp.ones((self.head_dim,), jnp.float32)
        self.k_norm_w = jnp.ones((self.head_dim,), jnp.float32)

    def _rope_tables(self, positions):
        d = self.head_dim
        inv_freq = 1.0 / (self.rope_theta **
                          (jnp.arange(0, d, 2, dtype=jnp.float32) / d))     # (d/2,)
        freqs = positions.astype(jnp.float32)[:, None] * inv_freq[None, :]  # (S, d/2)
        return jnp.cos(freqs), jnp.sin(freqs)

    def __call__(self, positions, hidden_states):
        S, _ = hidden_states.shape
        nh, nkv, d = self.num_heads, self.num_kv_heads, self.head_dim

        # --- fused QKV projection (f32 activations cast to bf16 in-kernel) ---
        qkv = pallas_matmul(hidden_states, self.w_qkv,
                            out_dtype=jnp.bfloat16)               # (S, q+2kv)

        # --- one fused per-head RMSNorm + RoPE kernel for q AND k ------------
        # Softmax scale folded into the q-norm weight row (scale * (xn*w) rotated
        # equals (xn*(scale*w)) rotated).
        cos, sin = self._rope_tables(positions)
        qk_norm_w = jnp.stack([self.q_norm_w * self.scaling, self.k_norm_w], axis=0)
        qk_rope = pallas_qk_norm_rope(
            qkv, qk_norm_w, cos, sin,
            num_q_heads=nh, num_kv_heads=nkv, head_dim=d,
            eps=self.rms_norm_eps, out_dtype=jnp.bfloat16)        # (S, (nh+nkv)*d)

        # --- flash causal GQA attention (group-packed, v from fused qkv) -----
        attn = pallas_flash_causal_gqa(
            qk_rope, qkv, num_heads=nh, num_kv_heads=nkv, head_dim=d,
            out_dtype=jnp.bfloat16)                               # (S, nh*d)

        # --- output projection ------------------------------------------------
        return pallas_matmul(attn, self.w_o, out_dtype=jnp.float32)  # (S, hidden)


# TODO(synk): RadixAttention's paged KV-cache / ForwardBatch bookkeeping and the
# tensor-parallel sharding of QKVParallelLinear/RowParallelLinear are serving
# infrastructure; this implements the tp_size=1 prefill math only.

if __name__ == "__main__":
    key = jax.random.PRNGKey(0)
    k_w, k_x = jax.random.split(key)

    # Small Qwen3-like config: hidden=256, 4 q heads, 2 kv heads, head_dim=128, S=16
    S, hidden = 16, 256
    module = Qwen3AttentionPallas(
        hidden_size=hidden,
        num_heads=4,
        num_kv_heads=2,
        head_dim=128,
        rope_theta=1000000.0,
        rms_norm_eps=1e-6,
        key=k_w,
    )

    hidden_states = jax.random.normal(k_x, (S, hidden), dtype=jnp.float32)
    positions = jnp.arange(S, dtype=jnp.int32)

    out = module(positions, hidden_states)
    jax.block_until_ready(out)
    assert out.shape == (S, hidden)
    assert bool(jnp.all(jnp.isfinite(out)))
    print("KERNEL_OK")
</pallas_src>

<mosaic_0001>
module attributes {stable_mosaic.version = 11 : i64} {
  func.func @_matmul_kernel(%arg0: i32, %arg1: i32, %arg2: i32, %arg3: memref<16x256xf32, #tpu.memory_space<vmem>>, %arg4: memref<256x512xbf16, #tpu.memory_space<vmem>>, %arg5: memref<16x512xbf16, #tpu.memory_space<vmem>>, %arg6: memref<16x512xf32, #tpu.memory_space<vmem>>) attributes {dimension_semantics = [#tpu.dimension_semantics<parallel>, #tpu.dimension_semantics<parallel>, #tpu.dimension_semantics<arbitrary>], iteration_bounds = array<i64: 1, 2, 1>, scalar_prefetch = 0 : i64, scratch_operands = 1 : i64, tpu.core_type = #tpu.core_type<tc>, window_params = [{transform_indices = @transform_0, window_bounds = array<i64: 16, 256>}, {transform_indices = @transform_1, window_bounds = array<i64: 256, 512>}, {transform_indices = @transform_2, window_bounds = array<i64: 16, 512>}]} {
    %c0_i32 = arith.constant 0 : i32
    %0 = arith.cmpi eq, %arg2, %c0_i32 : i32
    %1 = arith.extui %0 : i1 to i32
    %c0_i32_0 = arith.constant 0 : i32
    %2 = arith.cmpi ne, %1, %c0_i32_0 : i32
    scf.if %2 {
      %cst_10 = arith.constant 0.000000e+00 : f32
      %13 = vector.broadcast %cst_10 : f32 to vector<16x512xf32>
      %c0_11 = arith.constant 0 : index
      %c0_12 = arith.constant 0 : index
      %14 = vector.load %arg6[%c0_11, %c0_12] : memref<16x512xf32, #tpu.memory_space<vmem>>, vector<16x512xf32>
      tpu.vector_store %arg6[%c0_11, %c0_12], %13 {strides = array<i32>} : memref<16x512xf32, #tpu.memory_space<vmem>>, vector<16x512xf32>,
    } else {
    }
    %c0 = arith.constant 0 : index
    %c0_1 = arith.constant 0 : index
    %3 = vector.load %arg3[%c0, %c0_1] : memref<16x256xf32, #tpu.memory_space<vmem>>, vector<16x256xf32>
    %c0_2 = arith.constant 0 : index
    %c0_3 = arith.constant 0 : index
    %4 = vector.load %arg4[%c0_2, %c0_3] : memref<256x512xbf16, #tpu.memory_space<vmem>>, vector<256x512xbf16>
    %5 = arith.truncf %3 : vector<16x256xf32> to vector<16x256xbf16>
    %c0_4 = arith.constant 0 : index
    %c0_5 = arith.constant 0 : index
    %6 = vector.load %arg6[%c0_4, %c0_5] : memref<16x512xf32, #tpu.memory_space<vmem>>, vector<16x512xf32>
    %cst = arith.constant dense<0.000000e+00> : vector<16x512xf32>
    %7 = tpu.matmul %5, %4, %cst {dimension_numbers = #tpu.dot_dimension_numbers<[1], [0], [0], [1], [0, 0, 1, 1], [], []>} : vector<16x256xbf16>, vector<256x512xbf16>, vector<16x512xf32> -> vector<16x512xf32>
    %8 = arith.addf %6, %7 : vector<16x512xf32>
    %c0_6 = arith.constant 0 : index
    %c0_7 = arith.constant 0 : index
    %9 = vector.load %arg6[%c0_6, %c0_7] : memref<16x512xf32, #tpu.memory_space<vmem>>, vector<16x512xf32>
    tpu.vector_store %arg6[%c0_6, %c0_7], %8 {strides = array<i32>} : memref<16x512xf32, #tpu.memory_space<vmem>>, vector<16x512xf32>,
    %c0_i32_8 = arith.constant 0 : i32
    %10 = arith.cmpi eq, %arg2, %c0_i32_8 : i32
    %11 = arith.extui %10 : i1 to i32
    %c0_i32_9 = arith.constant 0 : i32
    %12 = arith.cmpi ne, %11, %c0_i32_9 : i32
    scf.if %12 {
      %c0_10 = arith.constant 0 : index
      %c0_11 = arith.constant 0 : index
      %13 = vector.load %arg6[%c0_10, %c0_11] : memref<16x512xf32, #tpu.memory_space<vmem>>, vector<16x512xf32>
      %14 = arith.truncf %13 : vector<16x512xf32> to vector<16x512xbf16>
      %c0_12 = arith.constant 0 : index
      %c0_13 = arith.constant 0 : index
      %15 = vector.load %arg5[%c0_12, %c0_13] : memref<16x512xbf16, #tpu.memory_space<vmem>>, vector<16x512xbf16>
      tpu.vector_store %arg5[%c0_12, %c0_13], %14 {strides = array<i32>} : memref<16x512xbf16, #tpu.memory_space<vmem>>, vector<16x512xbf16>,
    } else {
    }
    return
  }
  func.func @transform_0(%arg0: i32, %arg1: i32, %arg2: i32) -> (i32, i32) {
    %c0_i32 = arith.constant 0 : i32
    return %arg0, %arg2 : i32, i32
  }
  func.func @transform_1(%arg0: i32, %arg1: i32, %arg2: i32) -> (i32, i32) {
    %c0_i32 = arith.constant 0 : i32
    return %arg2, %arg1 : i32, i32
  }
  func.func @transform_2(%arg0: i32, %arg1: i32, %arg2: i32) -> (i32, i32) {
    %c0_i32 = arith.constant 0 : i32
    return %arg0, %arg1 : i32, i32
  }
}

</mosaic_0001>

<llo_original>
// kernel: tpu_custom_call.1
$region0: #{tpu_custom_call.1}
  #allocation0 [shape = 'u32[]', space=smem, size = 0x4, offset = 0x4, fixed_abs, tag = 'smem constant byte address 0x4 - core index']
  #allocation1 [shape = 'u32[72,128]{1,0:T(1,128)}', space=vmem, size = 0x9000, scoped, tag = 'internal scratch']
  #allocation2 [shape = 'f32[16,512]{1,0:T(8,128)}', space=vmem, size = 0x8000, scoped, tag = 'scratch operand']
  %s0 = inlined_call_operand.hbm [shape: f32[16,256], index: 0, kind: input, shape index: {}]
  %s1 = inlined_call_operand.hbm [shape: bf16[256,1024], index: 1, kind: input, shape index: {}]
  %s2 = inlined_call_operand.hbm [shape: bf16[16,1024], index: 2, kind: output, shape index: {}]
  %s3 = sld [smem:[#allocation0]]
  $region57: #{tpu_custom_call.1} parent=0
    _
  %s5 = ssub.s32 1, %s3
  %s6 = scalar_select 0, %s5, %s3
  $region1: #{tpu_custom_call.1} parent=0
    #allocation3 [shape = 'u8[16384]{0}', space=vmem, size = 0x4000, scoped, tag = 'input window, operand 0, single buffered']
    #allocation4 [shape = 's32[2]{0}', space=sflag, size = 0x8, scoped, tag = 'scoped memory for tpu_custom_call.1']
    #allocation5 [shape = 's32[2]{0}', space=sflag, size = 0x8, scoped, tag = 'scoped memory for tpu_custom_call.1']
    #allocation6 [shape = 'u8[524288]{0}', space=vmem, size = 0x80000, scoped, tag = 'input window, operand 1']
    #allocation7 [shape = 's32[2]{0}', space=sflag, size = 0x8, scoped, tag = 'scoped memory for tpu_custom_call.1']
    #allocation8 [shape = 'u8[32768]{0}', space=vmem, size = 0x8000, scoped, tag = 'output window, operand 0']
    %7 = vsyncpa [#allocation4], 0
    %8 = vsyncpa [#allocation7], 0
    %s9 = scalar_lea.sflag [#allocation7], 1
    %10 = vsyncpa %s9, 0
    %11 = vsyncpa [#allocation5], 0
    %s12 = scalar_lea.sflag [#allocation5], 1
    %13 = vsyncpa %s12, 0
    loop: start=0, step=1, limit=4
    $region2: #{tpu_custom_call.1} parent=1 // loop_pre_header
      _
    $region3: #{tpu_custom_call.1} parent=1 // loop_header
      %s15 = sphi 0, %s19
      %p16 = scmp.ge.s32.totalorder %s15, 4
      %s22 = sphi 0, %s41
      %s23 = sphi 0, %s37
      %s24 = sphi 0, %s33
      %s25 = sphi 0, %s22
      %s26 = sphi 0, %s23
      %s27 = sphi 0, %s24
      %s28 = sphi 0, %s25
      %s29 = sphi 0, %s26
      %s30 = sphi 0, %s27
      %s46 = sphi 0, %s48
      %s49 = sphi 0, %s46
      %s50 = sphi 0, %s49
      %s66 = sphi 0, %s50
      %s74 = sphi 0, %s76
      %s77 = sphi 0, %s74
      %s78 = sphi 0, %s77
      %s94 = sphi 0, %s78
      %s102 = sphi 0, %s104
      %s105 = sphi 0, %s102
      %s106 = sphi 0, %s105
      %s122 = sphi 0, %s106
    $region4: #{tpu_custom_call.1} parent=1 // loop_header_branch
      %18 = sbr.rel (%p16) target = $region8
    $region5: #{tpu_custom_call.1} parent=1 // loop_body
      %s20 = ssub.s32 %s15, 1
      %s21 = ssub.s32 %s15, 2
      %s31 = sadd.s32 1, %s24
      %p32 = scmp.ge.s32.totalorder %s31, 1
      %s33 = scalar_select %p32, 0, %s31
      %s34 = sadd.s32 1, %s23
      %s35 = scalar_select %p32, %s34, %s23
      %p36 = scmp.ge.s32.totalorder %s35, 2
      %s37 = scalar_select %p36, 0, %s35
      %s38 = sadd.s32 1, %s22
      %s39 = scalar_select %p36, %s38, %s22
      %p40 = scmp.ge.s32.totalorder %s39, 1
      %s41 = scalar_select %p40, 0, %s39
      %s42 = ssub.s32 %s22, %s41
      %s43 = ssub.s32 %s24, %s33
      %s44 = sor.u32 %s42, %s43
      %p45 = scmp.eq.s32.totalorder %s44, 0
      %s47 = sadd.s32 %s46, 1
      %s48 = scalar_select %p45, %s46, %s47
      %p51 = pneg %p45
      %p52 = scmp.eq.s32.totalorder %s15, 1
      %p53 = por %p51, %p52
      %p54 = scmp.ne.s32.totalorder %s46, %s49
      %p55 = scmp.eq.s32.totalorder %s15, 0
      %p56 = por %p54, %p55
      %p57 = scmp.ne.s32.totalorder %s46, %s49
      %p58 = scmp.eq.s32.totalorder %s20, 1
      %p59 = por %p57, %p58
      %p60 = scmp.ne.s32.totalorder %s49, %s50
      %p61 = scmp.eq.s32.totalorder %s20, 0
      %p62 = por %p60, %p61
      %p63 = scmp.ne.s32.totalorder %s49, %s50
      %p64 = scmp.eq.s32.totalorder %s21, 1
      %p65 = por %p63, %p64
      %p67 = scmp.ne.s32.totalorder %s50, %s66
      %p68 = scmp.eq.s32.totalorder %s21, 0
      %p69 = por %p67, %p68
      %s70 = ssub.s32 %s24, %s33
      %s71 = ssub.s32 %s23, %s37
      %s72 = sor.u32 %s70, %s71
      %p73 = scmp.eq.s32.totalorder %s72, 0
      %s75 = sadd.s32 %s74, 1
      %s76 = scalar_select %p73, %s74, %s75
      %p79 = pneg %p73
      %p80 = scmp.eq.s32.totalorder %s15, 1
      %p81 = por %p79, %p80
      %p82 = scmp.ne.s32.totalorder %s74, %s77
      %p83 = scmp.eq.s32.totalorder %s15, 0
      %p84 = por %p82, %p83
      %p85 = scmp.ne.s32.totalorder %s74, %s77
      %p86 = scmp.eq.s32.totalorder %s20, 1
      %p87 = por %p85, %p86
      %p88 = scmp.ne.s32.totalorder %s77, %s78
      %p89 = scmp.eq.s32.totalorder %s20, 0
      %p90 = por %p88, %p89
      %p91 = scmp.ne.s32.totalorder %s77, %s78
      %p92 = scmp.eq.s32.totalorder %s21, 1
      %p93 = por %p91, %p92
      %p95 = scmp.ne.s32.totalorder %s78, %s94
      %p96 = scmp.eq.s32.totalorder %s21, 0
      %p97 = por %p95, %p96
      %s98 = ssub.s32 %s22, %s41
      %s99 = ssub.s32 %s23, %s37
      %s100 = sor.u32 %s98, %s99
      %p101 = scmp.eq.s32.totalorder %s100, 0
      %s103 = sadd.s32 %s102, 1
      %s104 = scalar_select %p101, %s102, %s103
      %p107 = pneg %p101
      %p108 = scmp.eq.s32.totalorder %s15, 1
      %p109 = por %p107, %p108
      %p110 = scmp.ne.s32.totalorder %s102, %s105
      %p111 = scmp.eq.s32.totalorder %s15, 0
      %p112 = por %p110, %p111
      %p113 = scmp.ne.s32.totalorder %s102, %s105
      %p114 = scmp.eq.s32.totalorder %s20, 1
      %p115 = por %p113, %p114
      %p116 = scmp.ne.s32.totalorder %s105, %s106
      %p117 = scmp.eq.s32.totalorder %s20, 0
      %p118 = por %p116, %p117
      %p119 = scmp.ne.s32.totalorder %s105, %s106
      %p120 = scmp.eq.s32.totalorder %s21, 1
      %p121 = por %p119, %p120
      %p123 = scmp.ne.s32.totalorder %s106, %s122
      %p124 = scmp.eq.s32.totalorder %s21, 0
      %p125 = por %p123, %p124
      %p126 = scmp.le.s32.totalorder 1, %s15
      %p127 = scmp.lt.s32.totalorder %s15, 3
      %p128 = pnand %p126, %p127
      %p129 = pneg %p128
      // Predicated region
      $region9: #{tpu_custom_call.1} parent=5 // pred_check
        _
      $region10: #{tpu_custom_call.1} parent=5 // pred_check_branch
        %131 = sbr.rel (%p128) target = $region12
      $region11: #{tpu_custom_call.1} parent=5 // pred_region
        %s132 = ssub.s32 %s15, 1
        // Predicated region
        $region13: #{tpu_custom_call.1} parent=11 // pred_check
          %p133 = pneg %p62
        $region14: #{tpu_custom_call.1} parent=11 // pred_check_branch
          %135 = sbr.rel (%p133) target = $region16
        $region15: #{tpu_custom_call.1} parent=11 // pred_region
          %s136 = smul.u32 2, %s25
          %s137 = smul.u32 2, %s27
          %139 = vsyncadd [#allocation4], 0
          %s140 = smul.addr %s136, 2
          %s141 = sadd.s32 %s137, %s140
          %s142 = smul.addr %s141, 8
          %s143 = scalar_lea.hbm %s0, %s142
          %s144 = sshll.u32 %s143, 4
          %s145 = int_to_ptr.hbm [resolvable:$true] %s144
          %s146 = sshll.u32 [#allocation3], 4
          %s147 = int_to_ptr.vmem [resolvable:$true] %s146
          %152 = dma.hbm_to_vmem [thread:$0]  %s145, 512, %s147, [#allocation4], 256, 256, 16
        $region16: #{tpu_custom_call.1} parent=11 // pred_fallthru
          _
      $region12: #{tpu_custom_call.1} parent=5 // pred_fallthru
        _
      %p153 = scmp.lt.s32.totalorder %s15, 2
      // Predicated region
      $region17: #{tpu_custom_call.1} parent=5 // pred_check
        %p154 = pneg %p153
      $region18: #{tpu_custom_call.1} parent=5 // pred_check_branch
        %156 = sbr.rel (%p154) target = $region20
      $region19: #{tpu_custom_call.1} parent=5 // pred_region
        // Predicated region
        $region21: #{tpu_custom_call.1} parent=19 // pred_check
          %p157 = pneg %p84
        $region22: #{tpu_custom_call.1} parent=19 // pred_check_branch
          %159 = sbr.rel (%p157) target = $region24
        $region23: #{tpu_custom_call.1} parent=19 // pred_region
          %s160 = sand.u32 %s74, 1
          %s161 = scalar_lea.sflag [#allocation7], %s160
          %s162 = sand.u32 %s74, 1
          %s163 = smul.addr %s162, 512
          %s164 = scalar_lea.vmem [#allocation6], %s163
          %s165 = smul.u32 32, %s24
          %s166 = smul.u32 4, %s23
          %168 = vsyncadd %s161, 0
          %s169 = smul.addr %s165, 8
          %s170 = sadd.s32 %s166, %s169
          %s171 = smul.addr %s170, 4
          %s172 = scalar_lea.hbm %s1, %s171
          %s173 = sshll.u32 %s172, 4
          %s174 = int_to_ptr.hbm [resolvable:$true] %s173
          %s175 = sshll.u32 %s164, 4
          %s176 = int_to_ptr.vmem [resolvable:$true] %s175
          %181 = dma.hbm_to_vmem [thread:$0]  %s174, 8192, %s176, %s161, 512, 256, 16
        $region24: #{tpu_custom_call.1} parent=19 // pred_fallthru
          _
      $region20: #{tpu_custom_call.1} parent=5 // pred_fallthru
        _
      %p182 = scmp.le.s32.totalorder 1, %s15
      %p183 = scmp.lt.s32.totalorder %s15, 3
      %p184 = pnand %p182, %p183
      %p185 = pneg %p184
      // Predicated region
      $region25: #{tpu_custom_call.1} parent=5 // pred_check
        _
      $region26: #{tpu_custom_call.1} parent=5 // pred_check_branch
        %187 = sbr.rel (%p184) target = $region28
      $region27: #{tpu_custom_call.1} parent=5 // pred_region
        %s188 = ssub.s32 %s15, 1
        // Predicated region
        $region29: #{tpu_custom_call.1} parent=27 // pred_check
          %p189 = pneg %p62
        $region30: #{tpu_custom_call.1} parent=27 // pred_check_branch
          %191 = sbr.rel (%p189) target = $region32
        $region31: #{tpu_custom_call.1} parent=27 // pred_region
          %193 = dma.done [#allocation4], 512
        $region32: #{tpu_custom_call.1} parent=27 // pred_fallthru
          _
        %s194 = sand.u32 %s77, 1
        %s195 = scalar_lea.sflag [#allocation7], %s194
        %s196 = sand.u32 %s77, 1
        %s197 = smul.addr %s196, 512
        %s198 = scalar_lea.vmem [#allocation6], %s197
        // Predicated region
        $region33: #{tpu_custom_call.1} parent=27 // pred_check
          %p199 = pneg %p90
        $region34: #{tpu_custom_call.1} parent=27 // pred_check_branch
          %201 = sbr.rel (%p199) target = $region36
        $region35: #{tpu_custom_call.1} parent=27 // pred_region
          %203 = dma.done %s195, 8192
        $region36: #{tpu_custom_call.1} parent=27 // pred_fallthru
          _
        %p204 = pneg %p62
        %p205 = pneg %p59
        %s206 = sand.u32 %s77, 1
        %s207 = scalar_lea.sflag [#allocation7], %s206
        %s208 = sand.u32 %s77, 1
        %s209 = smul.addr %s208, 512
        %s210 = scalar_lea.vmem [#allocation6], %s209
        %p211 = pneg %p90
        %p212 = pneg %p87
        %p213 = pneg %p118
        %p214 = pneg %p115
        %s215 = sand.u32 %s105, 1
        %s216 = scalar_lea.sflag [#allocation5], %s215
        %s217 = sand.u32 %s105, 1
        %s218 = smul.addr %s217, 32
        %s219 = scalar_lea.vmem [#allocation8], %s218
        %s220 = smul.u32 2, %s25
        %s221 = smul.u32 2, %s27
        %s222 = smul.u32 32, %s27
        %s223 = smul.u32 4, %s26
        %s224 = smul.u32 2, %s25
        %s225 = smul.u32 4, %s26
        %p226 = scmp.eq.s32.totalorder %s27, 0
        // Predicated region
        $region37: #{tpu_custom_call.1} parent=27 // pred_check
          %p227 = pneg %p226
        $region38: #{tpu_custom_call.1} parent=27 // pred_check_branch
          %229 = sbr.rel (%p227) target = $region40
        $region39: #{tpu_custom_call.1} parent=27 // pred_region
          %230 = vst [vmem:[#allocation2] sm:$0xff] 0.0
          %231 = vst [vmem:[#allocation2 + $0x8] sm:$0xff] 0.0
          %232 = vst [vmem:[#allocation2 + $0x10] sm:$0xff] 0.0
          %233 = vst [vmem:[#allocation2 + $0x18] sm:$0xff] 0.0
          %234 = vst [vmem:[#allocation2 + $0x20] sm:$0xff] 0.0
          %235 = vst [vmem:[#allocation2 + $0x28] sm:$0xff] 0.0
          %236 = vst [vmem:[#allocation2 + $0x30] sm:$0xff] 0.0
          %237 = vst [vmem:[#allocation2 + $0x38] sm:$0xff] 0.0
        $region40: #{tpu_custom_call.1} parent=27 // pred_fallthru
          _
        %v238 = vld [vmem:[#allocation3] sm:$0xff]
        %v239 = vld [vmem:[#allocation3 + $0x8] sm:$0xff]
        %v240 = vld [vmem:[#allocation3 + $0x10] sm:$0xff]
        %v241 = vld [vmem:[#allocation3 + $0x18] sm:$0xff]
        %v242 = vld [vmem:[%s198] sm:$0xff]
        %v243 = vld [vmem:[%s198 + $0x8] sm:$0xff]
        %v244 = vld [vmem:[%s198 + $0x10] sm:$0xff]
        %v245 = vld [vmem:[%s198 + $0x18] sm:$0xff]
        %v246 = vld [vmem:[%s198 + $0x20] sm:$0xff]
        %v247 = vld [vmem:[%s198 + $0x28] sm:$0xff]
        %v248 = vld [vmem:[%s198 + $0x30] sm:$0xff]
        %v249 = vld [vmem:[%s198 + $0x38] sm:$0xff]
        %v250 = vld [vmem:[%s198 + $0x40] sm:$0xff]
        %v251 = vld [vmem:[%s198 + $0x48] sm:$0xff]
        %v252 = vld [vmem:[%s198 + $0x50] sm:$0xff]
        %v253 = vld [vmem:[%s198 + $0x58] sm:$0xff]
        %v254 = vld [vmem:[%s198 + $0x60] sm:$0xff]
        %v255 = vld [vmem:[%s198 + $0x68] sm:$0xff]
        %v256 = vld [vmem:[%s198 + $0x70] sm:$0xff]
        %v257 = vld [vmem:[%s198 + $0x78] sm:$0xff]
        %v258 = vld [vmem:[%s198 + $0x80] sm:$0xff]
        %v259 = vld [vmem:[%s198 + $0x88] sm:$0xff]
        %v260 = vld [vmem:[%s198 + $0x90] sm:$0xff]
        %v261 = vld [vmem:[%s198 + $0x98] sm:$0xff]
        %v262 = vld [vmem:[%s198 + $0xa0] sm:$0xff]
        %v263 = vld [vmem:[%s198 + $0xa8] sm:$0xff]
        %v264 = vld [vmem:[%s198 + $0xb0] sm:$0xff]
        %v265 = vld [vmem:[%s198 + $0xb8] sm:$0xff]
        %v266 = vld [vmem:[%s198 + $0xc0] sm:$0xff]
        %v267 = vld [vmem:[%s198 + $0xc8] sm:$0xff]
        %v268 = vld [vmem:[%s198 + $0xd0] sm:$0xff]
        %v269 = vld [vmem:[%s198 + $0xd8] sm:$0xff]
        %v270 = vld [vmem:[%s198 + $0xe0] sm:$0xff]
        %v271 = vld [vmem:[%s198 + $0xe8] sm:$0xff]
        %v272 = vld [vmem:[%s198 + $0xf0] sm:$0xff]
        %v273 = vld [vmem:[%s198 + $0xf8] sm:$0xff]
        %v274 = vld [vmem:[%s198 + $0x100] sm:$0xff]
        %v275 = vld [vmem:[%s198 + $0x108] sm:$0xff]
        %v276 = vld [vmem:[%s198 + $0x110] sm:$0xff]
        %v277 = vld [vmem:[%s198 + $0x118] sm:$0xff]
        %v278 = vld [vmem:[%s198 + $0x120] sm:$0xff]
        %v279 = vld [vmem:[%s198 + $0x128] sm:$0xff]
        %v280 = vld [vmem:[%s198 + $0x130] sm:$0xff]
        %v281 = vld [vmem:[%s198 + $0x138] sm:$0xff]
        %v282 = vld [vmem:[%s198 + $0x140] sm:$0xff]
        %v283 = vld [vmem:[%s198 + $0x148] sm:$0xff]
        %v284 = vld [vmem:[%s198 + $0x150] sm:$0xff]
        %v285 = vld [vmem:[%s198 + $0x158] sm:$0xff]
        %v286 = vld [vmem:[%s198 + $0x160] sm:$0xff]
        %v287 = vld [vmem:[%s198 + $0x168] sm:$0xff]
        %v288 = vld [vmem:[%s198 + $0x170] sm:$0xff]
        %v289 = vld [vmem:[%s198 + $0x178] sm:$0xff]
        %v290 = vld [vmem:[%s198 + $0x180] sm:$0xff]
        %v291 = vld [vmem:[%s198 + $0x188] sm:$0xff]
        %v292 = vld [vmem:[%s198 + $0x190] sm:$0xff]
        %v293 = vld [vmem:[%s198 + $0x198] sm:$0xff]
        %v294 = vld [vmem:[%s198 + $0x1a0] sm:$0xff]
        %v295 = vld [vmem:[%s198 + $0x1a8] sm:$0xff]
        %v296 = vld [vmem:[%s198 + $0x1b0] sm:$0xff]
        %v297 = vld [vmem:[%s198 + $0x1b8] sm:$0xff]
        %v298 = vld [vmem:[%s198 + $0x1c0] sm:$0xff]
        %v299 = vld [vmem:[%s198 + $0x1c8] sm:$0xff]
        %v300 = vld [vmem:[%s198 + $0x1d0] sm:$0xff]
        %v301 = vld [vmem:[%s198 + $0x1d8] sm:$0xff]
        %v302 = vld [vmem:[%s198 + $0x1e0] sm:$0xff]
        %v303 = vld [vmem:[%s198 + $0x1e8] sm:$0xff]
        %v304 = vld [vmem:[%s198 + $0x1f0] sm:$0xff]
        %v305 = vld [vmem:[%s198 + $0x1f8] sm:$0xff]
        %v306 = vpack.c.bf16 %v240, %v238
        %v307 = vpack.c.bf16 %v241, %v239
        %v308 = vld [vmem:[#allocation2] sm:$0xff]
        %v309 = vld [vmem:[#allocation2 + $0x8] sm:$0xff]
        %v310 = vld [vmem:[#allocation2 + $0x10] sm:$0xff]
        %v311 = vld [vmem:[#allocation2 + $0x18] sm:$0xff]
        %v312 = vld [vmem:[#allocation2 + $0x20] sm:$0xff]
        %v313 = vld [vmem:[#allocation2 + $0x28] sm:$0xff]
        %v314 = vld [vmem:[#allocation2 + $0x30] sm:$0xff]
        %v315 = vld [vmem:[#allocation2 + $0x38] sm:$0xff]
        %v380 = vunpack.c.l.b16 %v242
        %v381 = vunpack.c.h.b16 %v242
        %v382 = vunpack.c.l.b16 %v243
        %v383 = vunpack.c.h.b16 %v243
        %v384 = vunpack.c.l.b16 %v244
        %v385 = vunpack.c.h.b16 %v244
        %v386 = vunpack.c.l.b16 %v245
        %v387 = vunpack.c.h.b16 %v245
        %v388 = vunpack.c.l.b16 %v246
        %v389 = vunpack.c.h.b16 %v246
        %v390 = vunpack.c.l.b16 %v247
        %v391 = vunpack.c.h.b16 %v247
        %v392 = vunpack.c.l.b16 %v248
        %v393 = vunpack.c.h.b16 %v248
        %v394 = vunpack.c.l.b16 %v249
        %v395 = vunpack.c.h.b16 %v249
        %v396 = vunpack.c.l.b16 %v250
        %v397 = vunpack.c.h.b16 %v250
        %v398 = vunpack.c.l.b16 %v251
        %v399 = vunpack.c.h.b16 %v251
        %v400 = vunpack.c.l.b16 %v252
        %v401 = vunpack.c.h.b16 %v252
        %v402 = vunpack.c.l.b16 %v253
        %v403 = vunpack.c.h.b16 %v253
        %v404 = vunpack.c.l.b16 %v254
        %v405 = vunpack.c.h.b16 %v254
        %v406 = vunpack.c.l.b16 %v255
        %v407 = vunpack.c.h.b16 %v255
        %v408 = vunpack.c.l.b16 %v256
        %v409 = vunpack.c.h.b16 %v256
        %v410 = vunpack.c.l.b16 %v257
        %v411 = vunpack.c.h.b16 %v257
        %v412 = vunpack.c.l.b16 %v258
        %v413 = vunpack.c.h.b16 %v258
        %v414 = vunpack.c.l.b16 %v259
        %v415 = vunpack.c.h.b16 %v259
        %v416 = vunpack.c.l.b16 %v260
        %v417 = vunpack.c.h.b16 %v260
        %v418 = vunpack.c.l.b16 %v261
        %v419 = vunpack.c.h.b16 %v261
        %v420 = vunpack.c.l.b16 %v262
        %v421 = vunpack.c.h.b16 %v262
        %v422 = vunpack.c.l.b16 %v263
        %v423 = vunpack.c.h.b16 %v263
        %v424 = vunpack.c.l.b16 %v264
        %v425 = vunpack.c.h.b16 %v264
        %v426 = vunpack.c.l.b16 %v265
        %v427 = vunpack.c.h.b16 %v265
        %v428 = vunpack.c.l.b16 %v266
        %v429 = vunpack.c.h.b16 %v266
        %v430 = vunpack.c.l.b16 %v267
        %v431 = vunpack.c.h.b16 %v267
        %v432 = vunpack.c.l.b16 %v268
        %v433 = vunpack.c.h.b16 %v268
        %v434 = vunpack.c.l.b16 %v269
        %v435 = vunpack.c.h.b16 %v269
        %v436 = vunpack.c.l.b16 %v270
        %v437 = vunpack.c.h.b16 %v270
        %v438 = vunpack.c.l.b16 %v271
        %v439 = vunpack.c.h.b16 %v271
        %v440 = vunpack.c.l.b16 %v272
        %v441 = vunpack.c.h.b16 %v272
        %v442 = vunpack.c.l.b16 %v273
        %v443 = vunpack.c.h.b16 %v273
        %v444 = vunpack.c.l.b16 %v274
        %v445 = vunpack.c.h.b16 %v274
        %v446 = vunpack.c.l.b16 %v275
        %v447 = vunpack.c.h.b16 %v275
        %v448 = vunpack.c.l.b16 %v276
        %v449 = vunpack.c.h.b16 %v276
        %v450 = vunpack.c.l.b16 %v277
        %v451 = vunpack.c.h.b16 %v277
        %v452 = vunpack.c.l.b16 %v278
        %v453 = vunpack.c.h.b16 %v278
        %v454 = vunpack.c.l.b16 %v279
        %v455 = vunpack.c.h.b16 %v279
        %v456 = vunpack.c.l.b16 %v280
        %v457 = vunpack.c.h.b16 %v280
        %v458 = vunpack.c.l.b16 %v281
        %v459 = vunpack.c.h.b16 %v281
        %v460 = vunpack.c.l.b16 %v282
        %v461 = vunpack.c.h.b16 %v282
        %v462 = vunpack.c.l.b16 %v283
        %v463 = vunpack.c.h.b16 %v283
        %v464 = vunpack.c.l.b16 %v284
        %v465 = vunpack.c.h.b16 %v284
        %v466 = vunpack.c.l.b16 %v285
        %v467 = vunpack.c.h.b16 %v285
        %v468 = vunpack.c.l.b16 %v286
        %v469 = vunpack.c.h.b16 %v286
        %v470 = vunpack.c.l.b16 %v287
        %v471 = vunpack.c.h.b16 %v287
        %v472 = vunpack.c.l.b16 %v288
        %v473 = vunpack.c.h.b16 %v288
        %v474 = vunpack.c.l.b16 %v289
        %v475 = vunpack.c.h.b16 %v289
        %v476 = vunpack.c.l.b16 %v290
        %v477 = vunpack.c.h.b16 %v290
        %v478 = vunpack.c.l.b16 %v291
        %v479 = vunpack.c.h.b16 %v291
        %v480 = vunpack.c.l.b16 %v292
        %v481 = vunpack.c.h.b16 %v292
        %v482 = vunpack.c.l.b16 %v293
        %v483 = vunpack.c.h.b16 %v293
        %v484 = vunpack.c.l.b16 %v294
        %v485 = vunpack.c.h.b16 %v294
        %v486 = vunpack.c.l.b16 %v295
        %v487 = vunpack.c.h.b16 %v295
        %v488 = vunpack.c.l.b16 %v296
        %v489 = vunpack.c.h.b16 %v296
        %v490 = vunpack.c.l.b16 %v297
        %v491 = vunpack.c.h.b16 %v297
        %v492 = vunpack.c.l.b16 %v298
        %v493 = vunpack.c.h.b16 %v298
        %v494 = vunpack.c.l.b16 %v299
        %v495 = vunpack.c.h.b16 %v299
        %v496 = vunpack.c.l.b16 %v300
        %v497 = vunpack.c.h.b16 %v300
        %v498 = vunpack.c.l.b16 %v301
        %v499 = vunpack.c.h.b16 %v301
        %v500 = vunpack.c.l.b16 %v302
        %v501 = vunpack.c.h.b16 %v302
        %v502 = vunpack.c.l.b16 %v303
        %v503 = vunpack.c.h.b16 %v303
        %v504 = vunpack.c.l.b16 %v304
        %v505 = vunpack.c.h.b16 %v304
        %v506 = vunpack.c.l.b16 %v305
        %v507 = vunpack.c.h.b16 %v305
        %v508 = vpack.c.b16 %v384, %v380
        %v509 = vpack.c.b16 %v385, %v381
        %v510 = vpack.c.b16 %v386, %v382
        %v511 = vpack.c.b16 %v387, %v383
        %v512 = vpack.c.b16 %v392, %v388
        %v513 = vpack.c.b16 %v393, %v389
        %v514 = vpack.c.b16 %v394, %v390
        %v515 = vpack.c.b16 %v395, %v391
        %v516 = vpack.c.b16 %v400, %v396
        %v517 = vpack.c.b16 %v401, %v397
        %v518 = vpack.c.b16 %v402, %v398
        %v519 = vpack.c.b16 %v403, %v399
        %v520 = vpack.c.b16 %v408, %v404
        %v521 = vpack.c.b16 %v409, %v405
        %v522 = vpack.c.b16 %v410, %v406
        %v523 = vpack.c.b16 %v411, %v407
        %v524 = vpack.c.b16 %v416, %v412
        %v525 = vpack.c.b16 %v417, %v413
        %v526 = vpack.c.b16 %v418, %v414
        %v527 = vpack.c.b16 %v419, %v415
        %v528 = vpack.c.b16 %v424, %v420
        %v529 = vpack.c.b16 %v425, %v421
        %v530 = vpack.c.b16 %v426, %v422
        %v531 = vpack.c.b16 %v427, %v423
        %v532 = vpack.c.b16 %v432, %v428
        %v533 = vpack.c.b16 %v433, %v429
        %v534 = vpack.c.b16 %v434, %v430
        %v535 = vpack.c.b16 %v435, %v431
        %v536 = vpack.c.b16 %v440, %v436
        %v537 = vpack.c.b16 %v441, %v437
        %v538 = vpack.c.b16 %v442, %v438
        %v539 = vpack.c.b16 %v443, %v439
        %v540 = vpack.c.b16 %v448, %v444
        %v541 = vpack.c.b16 %v449, %v445
        %v542 = vpack.c.b16 %v450, %v446
        %v543 = vpack.c.b16 %v451, %v447
        %v544 = vpack.c.b16 %v456, %v452
        %v545 = vpack.c.b16 %v457, %v453
        %v546 = vpack.c.b16 %v458, %v454
        %v547 = vpack.c.b16 %v459, %v455
        %v548 = vpack.c.b16 %v464, %v460
        %v549 = vpack.c.b16 %v465, %v461
        %v550 = vpack.c.b16 %v466, %v462
        %v551 = vpack.c.b16 %v467, %v463
        %v552 = vpack.c.b16 %v472, %v468
        %v553 = vpack.c.b16 %v473, %v469
        %v554 = vpack.c.b16 %v474, %v470
        %v555 = vpack.c.b16 %v475, %v471
        %v556 = vpack.c.b16 %v480, %v476
        %v557 = vpack.c.b16 %v481, %v477
        %v558 = vpack.c.b16 %v482, %v478
        %v559 = vpack.c.b16 %v483, %v479
        %v560 = vpack.c.b16 %v488, %v484
        %v561 = vpack.c.b16 %v489, %v485
        %v562 = vpack.c.b16 %v490, %v486
        %v563 = vpack.c.b16 %v491, %v487
        %v564 = vpack.c.b16 %v496, %v492
        %v565 = vpack.c.b16 %v497, %v493
        %v566 = vpack.c.b16 %v498, %v494
        %v567 = vpack.c.b16 %v499, %v495
        %v568 = vpack.c.b16 %v504, %v500
        %v569 = vpack.c.b16 %v505, %v501
        %v570 = vpack.c.b16 %v506, %v502
        %v571 = vpack.c.b16 %v507, %v503
        %636 = vmatpush.bf16.msra.mxu0 %v536
        %637 = vmatpush.bf16.msra.mxu0 %v532
        %638 = vmatpush.bf16.msra.mxu0 %v528
        %639 = vmatpush.bf16.msra.mxu0 %v524
        %640 = vmatpush.bf16.msra.mxu0 %v520
        %641 = vmatpush.bf16.msra.mxu0 %v516
        %642 = vmatpush.bf16.msra.mxu0 %v512
        %643 = vmatpush.bf16.msra.mxu0 %v508
        %644 = vmatmul.bf16.gmra.mxu0 %v306
        %v645 = vpop.f32.mrf.mxu0
        %v646 = vadd.f32 0.0, %v645
        %v647 = vpop.f32.mrf.mxu0
        %v648 = vadd.f32 0.0, %v647
        %649 = vdwg.mxu0
        %650 = vmatpush.bf16.msra.mxu0 %v568
        %651 = vmatpush.bf16.msra.mxu0 %v564
        %652 = vmatpush.bf16.msra.mxu0 %v560
        %653 = vmatpush.bf16.msra.mxu0 %v556
        %654 = vmatpush.bf16.msra.mxu0 %v552
        %655 = vmatpush.bf16.msra.mxu0 %v548
        %656 = vmatpush.bf16.msra.mxu0 %v544
        %657 = vmatpush.bf16.msra.mxu0 %v540
        %658 = vmatmul.bf16.gmra.mxu0 %v307
        %v659 = vpop.f32.mrf.mxu0
        %v660 = vadd.f32 %v646, %v659
        %v661 = vpop.f32.mrf.mxu0
        %v662 = vadd.f32 %v648, %v661
        %663 = vdwg.mxu0
        %664 = vmatpush.bf16.msra.mxu0 %v537
        %665 = vmatpush.bf16.msra.mxu0 %v533
        %666 = vmatpush.bf16.msra.mxu0 %v529
        %667 = vmatpush.bf16.msra.mxu0 %v525
        %668 = vmatpush.bf16.msra.mxu0 %v521
        %669 = vmatpush.bf16.msra.mxu0 %v517
        %670 = vmatpush.bf16.msra.mxu0 %v513
        %671 = vmatpush.bf16.msra.mxu0 %v509
        %672 = vmatmul.bf16.gmra.mxu0 %v306
        %v673 = vpop.f32.mrf.mxu0
        %v674 = vadd.f32 0.0, %v673
        %v675 = vpop.f32.mrf.mxu0
        %v676 = vadd.f32 0.0, %v675
        %677 = vdwg.mxu0
        %678 = vmatpush.bf16.msra.mxu0 %v569
        %679 = vmatpush.bf16.msra.mxu0 %v565
        %680 = vmatpush.bf16.msra.mxu0 %v561
        %681 = vmatpush.bf16.msra.mxu0 %v557
        %682 = vmatpush.bf16.msra.mxu0 %v553
        %683 = vmatpush.bf16.msra.mxu0 %v549
        %684 = vmatpush.bf16.msra.mxu0 %v545
        %685 = vmatpush.bf16.msra.mxu0 %v541
        %686 = vmatmul.bf16.gmra.mxu0 %v307
        %v687 = vpop.f32.mrf.mxu0
        %v688 = vadd.f32 %v674, %v687
        %v689 = vpop.f32.mrf.mxu0
        %v690 = vadd.f32 %v676, %v689
        %691 = vdwg.mxu0
        %692 = vmatpush.bf16.msra.mxu0 %v538
        %693 = vmatpush.bf16.msra.mxu0 %v534
        %694 = vmatpush.bf16.msra.mxu0 %v530
        %695 = vmatpush.bf16.msra.mxu0 %v526
        %696 = vmatpush.bf16.msra.mxu0 %v522
        %697 = vmatpush.bf16.msra.mxu0 %v518
        %698 = vmatpush.bf16.msra.mxu0 %v514
        %699 = vmatpush.bf16.msra.mxu0 %v510
        %700 = vmatmul.bf16.gmra.mxu0 %v306
        %v701 = vpop.f32.mrf.mxu0
        %v702 = vadd.f32 0.0, %v701
        %v703 = vpop.f32.mrf.mxu0
        %v704 = vadd.f32 0.0, %v703
        %705 = vdwg.mxu0
        %706 = vmatpush.bf16.msra.mxu0 %v570
        %707 = vmatpush.bf16.msra.mxu0 %v566
        %708 = vmatpush.bf16.msra.mxu0 %v562
        %709 = vmatpush.bf16.msra.mxu0 %v558
        %710 = vmatpush.bf16.msra.mxu0 %v554
        %711 = vmatpush.bf16.msra.mxu0 %v550
        %712 = vmatpush.bf16.msra.mxu0 %v546
        %713 = vmatpush.bf16.msra.mxu0 %v542
        %714 = vmatmul.bf16.gmra.mxu0 %v307
        %v715 = vpop.f32.mrf.mxu0
        %v716 = vadd.f32 %v702, %v715
        %v717 = vpop.f32.mrf.mxu0
        %v718 = vadd.f32 %v704, %v717
        %719 = vdwg.mxu0
        %720 = vmatpush.bf16.msra.mxu0 %v539
        %721 = vmatpush.bf16.msra.mxu0 %v535
        %722 = vmatpush.bf16.msra.mxu0 %v531
        %723 = vmatpush.bf16.msra.mxu0 %v527
        %724 = vmatpush.bf16.msra.mxu0 %v523
        %725 = vmatpush.bf16.msra.mxu0 %v519
        %726 = vmatpush.bf16.msra.mxu0 %v515
        %727 = vmatpush.bf16.msra.mxu0 %v511
        %728 = vmatmul.bf16.gmra.mxu0 %v306
        %v729 = vpop.f32.mrf.mxu0
        %v730 = vadd.f32 0.0, %v729
        %v731 = vpop.f32.mrf.mxu0
        %v732 = vadd.f32 0.0, %v731
        %733 = vdwg.mxu0
        %734 = vmatpush.bf16.msra.mxu0 %v571
        %735 = vmatpush.bf16.msra.mxu0 %v567
        %736 = vmatpush.bf16.msra.mxu0 %v563
        %737 = vmatpush.bf16.msra.mxu0 %v559
        %738 = vmatpush.bf16.msra.mxu0 %v555
        %739 = vmatpush.bf16.msra.mxu0 %v551
        %740 = vmatpush.bf16.msra.mxu0 %v547
        %741 = vmatpush.bf16.msra.mxu0 %v543
        %742 = vmatmul.bf16.gmra.mxu0 %v307
        %v743 = vpop.f32.mrf.mxu0
        %v744 = vadd.f32 %v730, %v743
        %v745 = vpop.f32.mrf.mxu0
        %v746 = vadd.f32 %v732, %v745
        %747 = vdwg.mxu0
        %v748 = vadd.f32 %v308, %v660
        %v749 = vadd.f32 %v309, %v688
        %v750 = vadd.f32 %v310, %v716
        %v751 = vadd.f32 %v311, %v744
        %v752 = vadd.f32 %v312, %v662
        %v753 = vadd.f32 %v313, %v690
        %v754 = vadd.f32 %v314, %v718
        %v755 = vadd.f32 %v315, %v746
        %756 = vst [vmem:[#allocation2] sm:$0xff] %v748
        %757 = vst [vmem:[#allocation2 + $0x8] sm:$0xff] %v749
        %758 = vst [vmem:[#allocation2 + $0x10] sm:$0xff] %v750
        %759 = vst [vmem:[#allocation2 + $0x18] sm:$0xff] %v751
        %760 = vst [vmem:[#allocation2 + $0x20] sm:$0xff] %v752
        %761 = vst [vmem:[#allocation2 + $0x28] sm:$0xff] %v753
        %762 = vst [vmem:[#allocation2 + $0x30] sm:$0xff] %v754
        %763 = vst [vmem:[#allocation2 + $0x38] sm:$0xff] %v755
        // Predicated region
        $region41: #{tpu_custom_call.1} parent=27 // pred_check
          %p764 = pneg %p226
        $region42: #{tpu_custom_call.1} parent=27 // pred_check_branch
          %766 = sbr.rel (%p764) target = $region44
        $region43: #{tpu_custom_call.1} parent=27 // pred_region
          %v767 = vld [vmem:[#allocation2] sm:$0xff]
          %v768 = vld [vmem:[#allocation2 + $0x8] sm:$0xff]
          %v769 = vld [vmem:[#allocation2 + $0x10] sm:$0xff]
          %v770 = vld [vmem:[#allocation2 + $0x18] sm:$0xff]
          %v771 = vld [vmem:[#allocation2 + $0x20] sm:$0xff]
          %v772 = vld [vmem:[#allocation2 + $0x28] sm:$0xff]
          %v773 = vld [vmem:[#allocation2 + $0x30] sm:$0xff]
          %v774 = vld [vmem:[#allocation2 + $0x38] sm:$0xff]
          %v775 = vpack.c.bf16 %v768, %v767
          %v776 = vpack.c.bf16 %v770, %v769
          %v777 = vpack.c.bf16 %v772, %v771
          %v778 = vpack.c.bf16 %v774, %v773
          %779 = vst [vmem:[%s219] sm:$0xff] %v775
          %780 = vst [vmem:[%s219 + $0x8] sm:$0xff] %v776
          %781 = vst [vmem:[%s219 + $0x10] sm:$0xff] %v777
          %782 = vst [vmem:[%s219 + $0x18] sm:$0xff] %v778
        $region44: #{tpu_custom_call.1} parent=27 // pred_fallthru
          _
        %s783 = sand.u32 %s105, 1
        %s784 = scalar_lea.sflag [#allocation5], %s783
        %s785 = sand.u32 %s105, 1
        %s786 = smul.addr %s785, 32
        %s787 = scalar_lea.vmem [#allocation8], %s786
        // Predicated region
        $region45: #{tpu_custom_call.1} parent=27 // pred_check
          %p788 = pneg %p115
        $region46: #{tpu_custom_call.1} parent=27 // pred_check_branch
          %790 = sbr.rel (%p788) target = $region48
        $region47: #{tpu_custom_call.1} parent=27 // pred_region
          %s791 = smul.u32 2, %s25
          %s792 = smul.u32 4, %s26
          %794 = vsyncadd %s784, 0
          %s795 = smul.addr %s791, 8
          %s796 = sadd.s32 %s792, %s795
          %s797 = smul.addr %s796, 4
          %s798 = scalar_lea.hbm %s2, %s797
          %s799 = sshll.u32 %s787, 4
          %s800 = int_to_ptr.vmem [resolvable:$true] %s799
          %s801 = sshll.u32 %s798, 4
          %s802 = int_to_ptr.hbm [resolvable:$true] %s801
          %807 = dma.vmem_to_hbm [thread:$0]  %s800, 512, %s802, %s784, 256, 512, 16
        $region48: #{tpu_custom_call.1} parent=27 // pred_fallthru
          _
      $region28: #{tpu_custom_call.1} parent=5 // pred_fallthru
        _
      %p808 = scmp.le.s32.totalorder 2, %s15
      // Predicated region
      $region49: #{tpu_custom_call.1} parent=5 // pred_check
        %p809 = pneg %p808
      $region50: #{tpu_custom_call.1} parent=5 // pred_check_branch
        %811 = sbr.rel (%p809) target = $region52
      $region51: #{tpu_custom_call.1} parent=5 // pred_region
        %s812 = ssub.s32 %s15, 2
        // Predicated region
        $region53: #{tpu_custom_call.1} parent=51 // pred_check
          %p813 = pneg %p121
        $region54: #{tpu_custom_call.1} parent=51 // pred_check_branch
          %815 = sbr.rel (%p813) target = $region56
        $region55: #{tpu_custom_call.1} parent=51 // pred_region
          %s816 = sand.u32 %s106, 1
          %s817 = scalar_lea.sflag [#allocation5], %s816
          %s818 = sand.u32 %s106, 1
          %s819 = smul.addr %s818, 32
          %s820 = scalar_lea.vmem [#allocation8], %s819
          %822 = dma.done %s817, 512
        $region56: #{tpu_custom_call.1} parent=51 // pred_fallthru
          _
      $region52: #{tpu_custom_call.1} parent=5 // pred_fallthru
        _
    $region6: #{tpu_custom_call.1} parent=1 // loop_footer
      %s19 = sadd.s32 1, %s15
    $region7: #{tpu_custom_call.1} parent=1 // loop_footer_branch
      %14 = sbr.rel target = $region3
    $region8: #{tpu_custom_call.1} parent=1 // loop_exit
      _
    %823 = vsyncpa [#allocation4], 1
    %s824 = scalar_lea.sflag [#allocation4], 1
    %825 = vsyncpa %s824, 1
    %826 = vsyncpa [#allocation7], 1
    %s827 = scalar_lea.sflag [#allocation7], 1
    %828 = vsyncpa %s827, 1
    %829 = vsyncpa [#allocation5], 1
    %s830 = scalar_lea.sflag [#allocation5], 1
    %831 = vsyncpa %s830, 1

</llo_original>
